<compile_context>
chip_gen: v7x
topology: tpu7x:2x2x1
jax: 0.10.0
libtpu: 0.0.40
codegen_flags: <defaults>
</compile_context>

<pallas_src>
import jax
import jax.numpy as jnp
from jax.experimental import pallas as pl
from jax.experimental.pallas import tpu as pltpu


IN_FEATURES = 1000
HIDDEN = 50

# Batch-tile cap for the f32 x stream: 2048 x 1000 x 4B = 8 MiB per buffer,
# 16 MiB double-buffered -> comfortable on v7x's 64 MiB VMEM and v5e/v6e.
_TB_MAX = 2048


def _round_up(x, m):
    return -(-x // m) * m


def _mlp_kernel(x_ref, w1_ref, b1_ref, w2_ref, b2_ref, o_ref):
    # x_ref:  (TB, 1000) f32    batch tile of the flattened input (HBM stream)
    # w1_ref: (1000, 50) bf16   first_layer.weight.T (VMEM-resident across tiles)
    # b1_ref: (1, 50)    f32
    # w2_ref: (1, 50)    f32    second_layer.weight as a row
    # b2_ref: (1, 1)     f32    SMEM scalar
    # o_ref:  (TB, 1)    f32
    x_bf16 = x_ref[...].astype(jnp.bfloat16)      # VPU cast, hidden under x DMA
    h = jnp.dot(x_bf16, w1_ref[...],
                preferred_element_type=jnp.float32) + b1_ref[...]
    h = jnp.maximum(h, 0.0)                       # ReLU (f32 on the VPU)
    # Second layer: (TB,50)@(50,1) would waste 127/128 of the MXU columns, so
    # do it on the VPU/XLU: lane multiply + cross-lane sum.
    o = jnp.sum(h * w2_ref[...], axis=-1, keepdims=True) + b2_ref[0, 0]
    o_ref[...] = o.astype(o_ref.dtype)


def prepare_params(w1, b1, w2, b2):
    """One-time parameter prep (hoisted out of the per-forward path)."""
    return (
        w1.T.astype(jnp.bfloat16),               # (1000, 50)  MXU operand
        b1.reshape(1, -1).astype(jnp.float32),   # (1, 50)
        w2.reshape(1, -1).astype(jnp.float32),   # (1, 50) row
        b2.reshape(1, 1).astype(jnp.float32),    # (1, 1)  -> SMEM scalar
    )


def mlp_forward(x, w1t, b1_row, w2_row, b2_s):
    """x: (B, D1, D2) with D1*D2 == 1000.  Returns (B, 1) float32."""
    B = x.shape[0]
    xf = x.reshape(B, IN_FEATURES)               # torch.flatten(x, 1, 2); free

    # Batch tiling: aim for >=2 grid steps (so both v7x TensorCores get work),
    # tile a multiple of 8 sublanes, capped at _TB_MAX.  The grid is allowed to
    # be ragged: the last tile's OOB rows are padded on read and masked on
    # write by Pallas (no wrapper-side pad copy, no dead-row HBM traffic
    # beyond the final partial tile).
    tb = max(8, min(_TB_MAX, _round_up(pl.cdiv(B, 2), 8)))
    num_tiles = pl.cdiv(B, tb)
    grid = (num_tiles,)

    cost = pl.CostEstimate(
        flops=2 * B * IN_FEATURES * HIDDEN + 2 * B * HIDDEN,
        transcendentals=0,
        bytes_accessed=(xf.size * xf.dtype.itemsize       # f32 x stream
                        + w1t.size * 2                    # bf16 W1 (once)
                        + (b1_row.size + w2_row.size + b2_s.size) * 4
                        + B * 4),                         # f32 output
    )

    out = pl.pallas_call(
        _mlp_kernel,
        out_shape=jax.ShapeDtypeStruct((B, 1), jnp.float32),
        grid=grid,
        in_specs=[
            pl.BlockSpec((tb, IN_FEATURES), lambda i: (i, 0)),       # x tile
            pl.BlockSpec((IN_FEATURES, HIDDEN), lambda i: (0, 0)),   # W1 resident
            pl.BlockSpec((1, HIDDEN), lambda i: (0, 0)),             # b1 resident
            pl.BlockSpec((1, HIDDEN), lambda i: (0, 0)),             # w2 row resident
            pl.BlockSpec(memory_space=pltpu.MemorySpace.SMEM),       # b2 scalar
        ],
        out_specs=pl.BlockSpec((tb, 1), lambda i: (i, 0)),
        compiler_params=pltpu.CompilerParams(
            dimension_semantics=("parallel",),      # shard batch tiles across TCs
            vmem_limit_bytes=48 * 1024 * 1024,      # safe on 64 MiB v7x VMEM
        ),
        cost_estimate=cost,
    )(xf, w1t, b1_row, w2_row, b2_s)

    return out


if __name__ == "__main__":
    key = jax.random.PRNGKey(0)
    k_x, k_w1, k_b1, k_w2, k_b2 = jax.random.split(key, 5)

    B, D1, D2 = 8, 20, 50                        # D1*D2 = 1000 = in_features
    x = jax.random.normal(k_x, (B, D1, D2), dtype=jnp.float32)

    # PyTorch nn.Linear shapes: weight (out, in), bias (out,).
    bound1 = 1.0 / jnp.sqrt(1000.0)
    w1 = jax.random.uniform(k_w1, (50, 1000), minval=-bound1, maxval=bound1,
                            dtype=jnp.float32)
    b1 = jax.random.uniform(k_b1, (50,), minval=-bound1, maxval=bound1,
                            dtype=jnp.float32)
    bound2 = 1.0 / jnp.sqrt(50.0)
    w2 = jax.random.uniform(k_w2, (1, 50), minval=-bound2, maxval=bound2,
                            dtype=jnp.float32)
    b2 = jax.random.uniform(k_b2, (1,), minval=-bound2, maxval=bound2,
                            dtype=jnp.float32)

    params = prepare_params(w1, b1, w2, b2)       # hoisted: done once
    fwd = jax.jit(mlp_forward)

    out = jax.block_until_ready(fwd(x, *params))
    assert out.shape == (B, 1), out.shape

    # Reference with the same bf16 operands on the first matmul (f32 accum).
    xf = x.reshape(B, -1)
    h_ref = jnp.maximum(
        jnp.dot(xf.astype(jnp.bfloat16), w1.T.astype(jnp.bfloat16),
                preferred_element_type=jnp.float32) + b1, 0.0)
    ref = h_ref @ w2.T + b2
    assert jnp.allclose(out, ref, atol=2e-3, rtol=2e-3), (
        f"mismatch vs bf16 reference, max abs diff {jnp.max(jnp.abs(out - ref))}")

    # Loose sanity check against the pure-f32 PyTorch-equivalent reference
    # (bf16 MXU operands are an intentional deviation; accumulation is f32).
    ref_f32 = jnp.maximum(xf @ w1.T + b1, 0.0) @ w2.T + b2
    assert jnp.allclose(out, ref_f32, atol=1e-1, rtol=1e-1), (
        f"mismatch vs f32 reference, max abs diff {jnp.max(jnp.abs(out - ref_f32))}")

    print("KERNEL_OK")
</pallas_src>

<mosaic_0001>
module attributes {stable_mosaic.version = 11 : i64} {
  func.func @_mlp_kernel(%arg0: i32, %arg1: memref<8x1000xf32, #tpu.memory_space<vmem>>, %arg2: memref<1000x50xbf16, #tpu.memory_space<vmem>>, %arg3: memref<1x50xf32, #tpu.memory_space<vmem>>, %arg4: memref<1x50xf32, #tpu.memory_space<vmem>>, %arg5: memref<1x1xf32, #tpu.memory_space<smem>>, %arg6: memref<8x1xf32, #tpu.memory_space<vmem>>) attributes {dimension_semantics = [#tpu.dimension_semantics<parallel>], iteration_bounds = array<i64: 1>, scalar_prefetch = 0 : i64, scratch_operands = 0 : i64, tpu.core_type = #tpu.core_type<tc>, window_params = [{transform_indices = @transform_0, window_bounds = array<i64: 8, 1000>}, {pipeline_mode = #tpu.pipeline_mode<synchronous>, transform_indices = @transform_1, window_bounds = array<i64: 1000, 50>}, {pipeline_mode = #tpu.pipeline_mode<synchronous>, transform_indices = @transform_2, window_bounds = array<i64: 1, 50>}, {pipeline_mode = #tpu.pipeline_mode<synchronous>, transform_indices = @transform_3, window_bounds = array<i64: 1, 50>}, {transform_indices = @transform_4, window_bounds = array<i64: 1, 1>}, {transform_indices = @transform_5, window_bounds = array<i64: 8, 1>}]} {
    %c0 = arith.constant 0 : index
    %c0_0 = arith.constant 0 : index
    %0 = vector.load %arg1[%c0, %c0_0] : memref<8x1000xf32, #tpu.memory_space<vmem>>, vector<8x1000xf32>
    %1 = arith.truncf %0 : vector<8x1000xf32> to vector<8x1000xbf16>
    %c0_1 = arith.constant 0 : index
    %c0_2 = arith.constant 0 : index
    %2 = vector.load %arg2[%c0_1, %c0_2] : memref<1000x50xbf16, #tpu.memory_space<vmem>>, vector<1000x50xbf16>
    %cst = arith.constant dense<0.000000e+00> : vector<8x50xf32>
    %3 = tpu.matmul %1, %2, %cst {dimension_numbers = #tpu.dot_dimension_numbers<[1], [0], [0], [1], [0, 0, 1, 1], [], []>} : vector<8x1000xbf16>, vector<1000x50xbf16>, vector<8x50xf32> -> vector<8x50xf32>
    %c0_3 = arith.constant 0 : index
    %c0_4 = arith.constant 0 : index
    %4 = vector.load %arg3[%c0_3, %c0_4] : memref<1x50xf32, #tpu.memory_space<vmem>>, vector<1x50xf32>
    %5 = vector.broadcast %4 : vector<1x50xf32> to vector<8x50xf32>
    %6 = arith.addf %3, %5 : vector<8x50xf32>
    %cst_5 = arith.constant 0.000000e+00 : f32
    %7 = vector.broadcast %cst_5 : f32 to vector<8x50xf32>
    %8 = arith.maximumf %6, %7 : vector<8x50xf32>
    %c0_6 = arith.constant 0 : index
    %c0_7 = arith.constant 0 : index
    %9 = vector.load %arg4[%c0_6, %c0_7] : memref<1x50xf32, #tpu.memory_space<vmem>>, vector<1x50xf32>
    %10 = vector.broadcast %9 : vector<1x50xf32> to vector<8x50xf32>
    %11 = arith.mulf %8, %10 : vector<8x50xf32>
    %cst_8 = arith.constant dense<0.000000e+00> : vector<8xf32>
    %12 = vector.multi_reduction <add>, %11, %cst_8 [1] : vector<8x50xf32> to vector<8xf32>
    %13 = vector.shape_cast %12 : vector<8xf32> to vector<8x1xf32>
    %c0_9 = arith.constant 0 : index
    %c0_10 = arith.constant 0 : index
    %14 = memref.load %arg5[%c0_9, %c0_10] : memref<1x1xf32, #tpu.memory_space<smem>>
    %15 = vector.broadcast %14 : f32 to vector<8x1xf32>
    %16 = arith.addf %13, %15 : vector<8x1xf32>
    %c0_11 = arith.constant 0 : index
    %c0_12 = arith.constant 0 : index
    %17 = vector.load %arg6[%c0_11, %c0_12] : memref<8x1xf32, #tpu.memory_space<vmem>>, vector<8x1xf32>
    tpu.vector_store %arg6[%c0_11, %c0_12], %16 {strides = array<i32>} : memref<8x1xf32, #tpu.memory_space<vmem>>, vector<8x1xf32>,
    return
  }
  func.func @transform_0(%arg0: i32) -> (i32, i32) {
    %c0_i32 = arith.constant 0 : i32
    %c0_i32_0 = arith.constant 0 : i32
    return %arg0, %c0_i32 : i32, i32
  }
  func.func @transform_1(%arg0: i32) -> (i32, i32) {
    %c0_i32 = arith.constant 0 : i32
    %c0_i32_0 = arith.constant 0 : i32
    %c0_i32_1 = arith.constant 0 : i32
    return %c0_i32, %c0_i32_0 : i32, i32
  }
  func.func @transform_2(%arg0: i32) -> (i32, i32) {
    %c0_i32 = arith.constant 0 : i32
    %c0_i32_0 = arith.constant 0 : i32
    %c0_i32_1 = arith.constant 0 : i32
    return %c0_i32, %c0_i32_0 : i32, i32
  }
  func.func @transform_3(%arg0: i32) -> (i32, i32) {
    %c0_i32 = arith.constant 0 : i32
    %c0_i32_0 = arith.constant 0 : i32
    %c0_i32_1 = arith.constant 0 : i32
    return %c0_i32, %c0_i32_0 : i32, i32
  }
  func.func @transform_4(%arg0: i32) -> (i32, i32) {
    %c0_i32 = arith.constant 0 : i32
    %c0_i32_0 = arith.constant 0 : i32
    %c0_i32_1 = arith.constant 0 : i32
    return %c0_i32, %c0_i32_0 : i32, i32
  }
  func.func @transform_5(%arg0: i32) -> (i32, i32) {
    %c0_i32 = arith.constant 0 : i32
    %c0_i32_0 = arith.constant 0 : i32
    return %arg0, %c0_i32 : i32, i32
  }
}

</mosaic_0001>

<llo_original>
// kernel: mlp_forward.1
$region0: #{mlp_forward.1}
  #allocation0 [shape = 'u32[]', space=smem, size = 0x4, offset = 0x4, fixed_abs, tag = 'smem constant byte address 0x4 - core index']
  #allocation1 [shape = 'u32[144,128]{1,0:T(1,128)}', space=vmem, size = 0x12000, scoped, tag = 'internal scratch']
  #allocation2 [shape = 'f32[1,1]{1,0:T(1,128)S(6)}', space=smem, size = 0x200, scoped, tag = 'scoped memory for mlp_forward.1']
  %s0 = inlined_call_operand.vmem [shape: f32[8,1000], index: 0, kind: input, shape index: {}]
  %s1 = inlined_call_operand.vmem [shape: bf16[1000,50], index: 1, kind: input, shape index: {}]
  %s2 = inlined_call_operand.vmem [shape: f32[1,50], index: 2, kind: input, shape index: {}]
  %s3 = inlined_call_operand.vmem [shape: f32[1,50], index: 3, kind: input, shape index: {}]
  %s4 = inlined_call_operand.<no memory space> [shape: f32[1,1], index: 4, kind: input, shape index: {}]
  %s5 = inlined_call_operand.vmem [shape: f32[8,1], index: 5, kind: output, shape index: {}]
  %s6 = sld [smem:[#allocation0]]
  $region30: #{mlp_forward.1} parent=0
    _
  %s8 = ssub.s32 1, %s6
  %s9 = scalar_select 0, %s8, %s6
  %10 = sst [smem:[#allocation2]] %s4
  // Predicated region
  $region2: #{mlp_forward.1} parent=0 // pred_check
    _
  $region3: #{mlp_forward.1} parent=0 // pred_check_branch
    %12 = sbr.rel (0) target = $region5
  $region4: #{mlp_forward.1} parent=0 // pred_region
    _
  $region5: #{mlp_forward.1} parent=0 // pred_fallthru
    _
  // Predicated region
  $region6: #{mlp_forward.1} parent=0 // pred_check
    _
  $region7: #{mlp_forward.1} parent=0 // pred_check_branch
    %14 = sbr.rel (0) target = $region9
  $region8: #{mlp_forward.1} parent=0 // pred_region
    _
  $region9: #{mlp_forward.1} parent=0 // pred_fallthru
    _
  // Predicated region
  $region10: #{mlp_forward.1} parent=0 // pred_check
    _
  $region11: #{mlp_forward.1} parent=0 // pred_check_branch
    %16 = sbr.rel (0) target = $region13
  $region12: #{mlp_forward.1} parent=0 // pred_region
    _
  $region13: #{mlp_forward.1} parent=0 // pred_fallthru
    _
  // Predicated region
  $region14: #{mlp_forward.1} parent=0 // pred_check
    _
  $region15: #{mlp_forward.1} parent=0 // pred_check_branch
    %18 = sbr.rel (0) target = $region17
  $region16: #{mlp_forward.1} parent=0 // pred_region
    _
  $region17: #{mlp_forward.1} parent=0 // pred_fallthru
    _
  // Predicated region
  $region18: #{mlp_forward.1} parent=0 // pred_check
    _
  $region19: #{mlp_forward.1} parent=0 // pred_check_branch
    %20 = sbr.rel (0) target = $region21
  $region20: #{mlp_forward.1} parent=0 // pred_region
    _
  $region21: #{mlp_forward.1} parent=0 // pred_fallthru
    _
  %v22 = vld [vmem:[%s0] sm:$0xff]
  %v23 = vld [vmem:[%s0 + $0x8] sm:$0xff]
  %v24 = vld [vmem:[%s0 + $0x10] sm:$0xff]
  %v25 = vld [vmem:[%s0 + $0x18] sm:$0xff]
  %v26 = vld [vmem:[%s0 + $0x20] sm:$0xff]
  %v27 = vld [vmem:[%s0 + $0x28] sm:$0xff]
  %v28 = vld [vmem:[%s0 + $0x30] sm:$0xff]
  %v29 = vld [vmem:[%s0 + $0x38] sm:$0xff]
  %v30 = vpack.c.bf16 %v22, %v22
  %v31 = vpack.c.bf16 %v23, %v23
  %v32 = vpack.c.bf16 %v24, %v24
  %v33 = vpack.c.bf16 %v25, %v25
  %v34 = vpack.c.bf16 %v26, %v26
  %v35 = vpack.c.bf16 %v27, %v27
  %v36 = vpack.c.bf16 %v28, %v28
  %v37 = vpack.c.bf16 %v29, %v29
  %v38 = vld [vmem:[%s1] sm:$0xf]
  %v39 = vld [vmem:[%s1 + $0x4] sm:$0xf]
  %v40 = vld [vmem:[%s1 + $0x8] sm:$0xf]
  %v41 = vld [vmem:[%s1 + $0xc] sm:$0xf]
  %v42 = vld [vmem:[%s1 + $0x10] sm:$0xf]
  %v43 = vld [vmem:[%s1 + $0x14] sm:$0xf]
  %v44 = vld [vmem:[%s1 + $0x18] sm:$0xf]
  %v45 = vld [vmem:[%s1 + $0x1c] sm:$0xf]
  %v46 = vld [vmem:[%s1 + $0x20] sm:$0xf]
  %v47 = vld [vmem:[%s1 + $0x24] sm:$0xf]
  %v48 = vld [vmem:[%s1 + $0x28] sm:$0xf]
  %v49 = vld [vmem:[%s1 + $0x2c] sm:$0xf]
  %v50 = vld [vmem:[%s1 + $0x30] sm:$0xf]
  %v51 = vld [vmem:[%s1 + $0x34] sm:$0xf]
  %v52 = vld [vmem:[%s1 + $0x38] sm:$0xf]
  %v53 = vld [vmem:[%s1 + $0x3c] sm:$0xf]
  %v54 = vld [vmem:[%s1 + $0x40] sm:$0xf]
  %v55 = vld [vmem:[%s1 + $0x44] sm:$0xf]
  %v56 = vld [vmem:[%s1 + $0x48] sm:$0xf]
  %v57 = vld [vmem:[%s1 + $0x4c] sm:$0xf]
  %v58 = vld [vmem:[%s1 + $0x50] sm:$0xf]
  %v59 = vld [vmem:[%s1 + $0x54] sm:$0xf]
  %v60 = vld [vmem:[%s1 + $0x58] sm:$0xf]
  %v61 = vld [vmem:[%s1 + $0x5c] sm:$0xf]
  %v62 = vld [vmem:[%s1 + $0x60] sm:$0xf]
  %v63 = vld [vmem:[%s1 + $0x64] sm:$0xf]
  %v64 = vld [vmem:[%s1 + $0x68] sm:$0xf]
  %v65 = vld [vmem:[%s1 + $0x6c] sm:$0xf]
  %v66 = vld [vmem:[%s1 + $0x70] sm:$0xf]
  %v67 = vld [vmem:[%s1 + $0x74] sm:$0xf]
  %v68 = vld [vmem:[%s1 + $0x78] sm:$0xf]
  %v69 = vld [vmem:[%s1 + $0x7c] sm:$0xf]
  %v70 = vld [vmem:[%s1 + $0x80] sm:$0xf]
  %v71 = vld [vmem:[%s1 + $0x84] sm:$0xf]
  %v72 = vld [vmem:[%s1 + $0x88] sm:$0xf]
  %v73 = vld [vmem:[%s1 + $0x8c] sm:$0xf]
  %v74 = vld [vmem:[%s1 + $0x90] sm:$0xf]
  %v75 = vld [vmem:[%s1 + $0x94] sm:$0xf]
  %v76 = vld [vmem:[%s1 + $0x98] sm:$0xf]
  %v77 = vld [vmem:[%s1 + $0x9c] sm:$0xf]
  %v78 = vld [vmem:[%s1 + $0xa0] sm:$0xf]
  %v79 = vld [vmem:[%s1 + $0xa4] sm:$0xf]
  %v80 = vld [vmem:[%s1 + $0xa8] sm:$0xf]
  %v81 = vld [vmem:[%s1 + $0xac] sm:$0xf]
  %v82 = vld [vmem:[%s1 + $0xb0] sm:$0xf]
  %v83 = vld [vmem:[%s1 + $0xb4] sm:$0xf]
  %v84 = vld [vmem:[%s1 + $0xb8] sm:$0xf]
  %v85 = vld [vmem:[%s1 + $0xbc] sm:$0xf]
  %v86 = vld [vmem:[%s1 + $0xc0] sm:$0xf]
  %v87 = vld [vmem:[%s1 + $0xc4] sm:$0xf]
  %v88 = vld [vmem:[%s1 + $0xc8] sm:$0xf]
  %v89 = vld [vmem:[%s1 + $0xcc] sm:$0xf]
  %v90 = vld [vmem:[%s1 + $0xd0] sm:$0xf]
  %v91 = vld [vmem:[%s1 + $0xd4] sm:$0xf]
  %v92 = vld [vmem:[%s1 + $0xd8] sm:$0xf]
  %v93 = vld [vmem:[%s1 + $0xdc] sm:$0xf]
  %v94 = vld [vmem:[%s1 + $0xe0] sm:$0xf]
  %v95 = vld [vmem:[%s1 + $0xe4] sm:$0xf]
  %v96 = vld [vmem:[%s1 + $0xe8] sm:$0xf]
  %v97 = vld [vmem:[%s1 + $0xec] sm:$0xf]
  %v98 = vld [vmem:[%s1 + $0xf0] sm:$0xf]
  %v99 = vld [vmem:[%s1 + $0xf4] sm:$0xf]
  %v100 = vld [vmem:[%s1 + $0xf8] sm:$0xf]
  %v101 = vld [vmem:[%s1 + $0xfc] sm:$0xf]
  %v102 = vld [vmem:[%s1 + $0x100] sm:$0xf]
  %v103 = vld [vmem:[%s1 + $0x104] sm:$0xf]
  %v104 = vld [vmem:[%s1 + $0x108] sm:$0xf]
  %v105 = vld [vmem:[%s1 + $0x10c] sm:$0xf]
  %v106 = vld [vmem:[%s1 + $0x110] sm:$0xf]
  %v107 = vld [vmem:[%s1 + $0x114] sm:$0xf]
  %v108 = vld [vmem:[%s1 + $0x118] sm:$0xf]
  %v109 = vld [vmem:[%s1 + $0x11c] sm:$0xf]
  %v110 = vld [vmem:[%s1 + $0x120] sm:$0xf]
  %v111 = vld [vmem:[%s1 + $0x124] sm:$0xf]
  %v112 = vld [vmem:[%s1 + $0x128] sm:$0xf]
  %v113 = vld [vmem:[%s1 + $0x12c] sm:$0xf]
  %v114 = vld [vmem:[%s1 + $0x130] sm:$0xf]
  %v115 = vld [vmem:[%s1 + $0x134] sm:$0xf]
  %v116 = vld [vmem:[%s1 + $0x138] sm:$0xf]
  %v117 = vld [vmem:[%s1 + $0x13c] sm:$0xf]
  %v118 = vld [vmem:[%s1 + $0x140] sm:$0xf]
  %v119 = vld [vmem:[%s1 + $0x144] sm:$0xf]
  %v120 = vld [vmem:[%s1 + $0x148] sm:$0xf]
  %v121 = vld [vmem:[%s1 + $0x14c] sm:$0xf]
  %v122 = vld [vmem:[%s1 + $0x150] sm:$0xf]
  %v123 = vld [vmem:[%s1 + $0x154] sm:$0xf]
  %v124 = vld [vmem:[%s1 + $0x158] sm:$0xf]
  %v125 = vld [vmem:[%s1 + $0x15c] sm:$0xf]
  %v126 = vld [vmem:[%s1 + $0x160] sm:$0xf]
  %v127 = vld [vmem:[%s1 + $0x164] sm:$0xf]
  %v128 = vld [vmem:[%s1 + $0x168] sm:$0xf]
  %v129 = vld [vmem:[%s1 + $0x16c] sm:$0xf]
  %v130 = vld [vmem:[%s1 + $0x170] sm:$0xf]
  %v131 = vld [vmem:[%s1 + $0x174] sm:$0xf]
  %v132 = vld [vmem:[%s1 + $0x178] sm:$0xf]
  %v133 = vld [vmem:[%s1 + $0x17c] sm:$0xf]
  %v134 = vld [vmem:[%s1 + $0x180] sm:$0xf]
  %v135 = vld [vmem:[%s1 + $0x184] sm:$0xf]
  %v136 = vld [vmem:[%s1 + $0x188] sm:$0xf]
  %v137 = vld [vmem:[%s1 + $0x18c] sm:$0xf]
  %v138 = vld [vmem:[%s1 + $0x190] sm:$0xf]
  %v139 = vld [vmem:[%s1 + $0x194] sm:$0xf]
  %v140 = vld [vmem:[%s1 + $0x198] sm:$0xf]
  %v141 = vld [vmem:[%s1 + $0x19c] sm:$0xf]
  %v142 = vld [vmem:[%s1 + $0x1a0] sm:$0xf]
  %v143 = vld [vmem:[%s1 + $0x1a4] sm:$0xf]
  %v144 = vld [vmem:[%s1 + $0x1a8] sm:$0xf]
  %v145 = vld [vmem:[%s1 + $0x1ac] sm:$0xf]
  %v146 = vld [vmem:[%s1 + $0x1b0] sm:$0xf]
  %v147 = vld [vmem:[%s1 + $0x1b4] sm:$0xf]
  %v148 = vld [vmem:[%s1 + $0x1b8] sm:$0xf]
  %v149 = vld [vmem:[%s1 + $0x1bc] sm:$0xf]
  %v150 = vld [vmem:[%s1 + $0x1c0] sm:$0xf]
  %v151 = vld [vmem:[%s1 + $0x1c4] sm:$0xf]
  %v152 = vld [vmem:[%s1 + $0x1c8] sm:$0xf]
  %v153 = vld [vmem:[%s1 + $0x1cc] sm:$0xf]
  %v154 = vld [vmem:[%s1 + $0x1d0] sm:$0xf]
  %v155 = vld [vmem:[%s1 + $0x1d4] sm:$0xf]
  %v156 = vld [vmem:[%s1 + $0x1d8] sm:$0xf]
  %v157 = vld [vmem:[%s1 + $0x1dc] sm:$0xf]
  %v158 = vld [vmem:[%s1 + $0x1e0] sm:$0xf]
  %v159 = vld [vmem:[%s1 + $0x1e4] sm:$0xf]
  %v160 = vld [vmem:[%s1 + $0x1e8] sm:$0xf]
  %v161 = vld [vmem:[%s1 + $0x1ec] sm:$0xf]
  %v162 = vld [vmem:[%s1 + $0x1f0] sm:$0xf]
  %v163 = vld [vmem:[%s2] sm:$0x1]
  %v165 = vlaneseq
  %v166 = vshrl.u32 %v165, 7
  %v167 = vsub.s32 0, %v166
  %v168 = vrot.slane %v163, %v167
  %v295 = vunpack.c.l.b16 %v38
  %v296 = vunpack.c.l.b16 %v39
  %v297 = vunpack.c.l.b16 %v40
  %v298 = vunpack.c.l.b16 %v41
  %v299 = vunpack.c.l.b16 %v42
  %v300 = vunpack.c.l.b16 %v43
  %v301 = vunpack.c.l.b16 %v44
  %v302 = vunpack.c.l.b16 %v45
  %v303 = vunpack.c.l.b16 %v46
  %v304 = vunpack.c.l.b16 %v47
  %v305 = vunpack.c.l.b16 %v48
  %v306 = vunpack.c.l.b16 %v49
  %v307 = vunpack.c.l.b16 %v50
  %v308 = vunpack.c.l.b16 %v51
  %v309 = vunpack.c.l.b16 %v52
  %v310 = vunpack.c.l.b16 %v53
  %v311 = vunpack.c.l.b16 %v54
  %v312 = vunpack.c.l.b16 %v55
  %v313 = vunpack.c.l.b16 %v56
  %v314 = vunpack.c.l.b16 %v57
  %v315 = vunpack.c.l.b16 %v58
  %v316 = vunpack.c.l.b16 %v59
  %v317 = vunpack.c.l.b16 %v60
  %v318 = vunpack.c.l.b16 %v61
  %v319 = vunpack.c.l.b16 %v62
  %v320 = vunpack.c.l.b16 %v63
  %v321 = vunpack.c.l.b16 %v64
  %v322 = vunpack.c.l.b16 %v65
  %v323 = vunpack.c.l.b16 %v66
  %v324 = vunpack.c.l.b16 %v67
  %v325 = vunpack.c.l.b16 %v68
  %v326 = vunpack.c.l.b16 %v69
  %v327 = vunpack.c.l.b16 %v70
  %v328 = vunpack.c.l.b16 %v71
  %v329 = vunpack.c.l.b16 %v72
  %v330 = vunpack.c.l.b16 %v73
  %v331 = vunpack.c.l.b16 %v74
  %v332 = vunpack.c.l.b16 %v75
  %v333 = vunpack.c.l.b16 %v76
  %v334 = vunpack.c.l.b16 %v77
  %v335 = vunpack.c.l.b16 %v78
  %v336 = vunpack.c.l.b16 %v79
  %v337 = vunpack.c.l.b16 %v80
  %v338 = vunpack.c.l.b16 %v81
  %v339 = vunpack.c.l.b16 %v82
  %v340 = vunpack.c.l.b16 %v83
  %v341 = vunpack.c.l.b16 %v84
  %v342 = vunpack.c.l.b16 %v85
  %v343 = vunpack.c.l.b16 %v86
  %v344 = vunpack.c.l.b16 %v87
  %v345 = vunpack.c.l.b16 %v88
  %v346 = vunpack.c.l.b16 %v89
  %v347 = vunpack.c.l.b16 %v90
  %v348 = vunpack.c.l.b16 %v91
  %v349 = vunpack.c.l.b16 %v92
  %v350 = vunpack.c.l.b16 %v93
  %v351 = vunpack.c.l.b16 %v94
  %v352 = vunpack.c.l.b16 %v95
  %v353 = vunpack.c.l.b16 %v96
  %v354 = vunpack.c.l.b16 %v97
  %v355 = vunpack.c.l.b16 %v98
  %v356 = vunpack.c.l.b16 %v99
  %v357 = vunpack.c.l.b16 %v100
  %v358 = vunpack.c.l.b16 %v101
  %v359 = vunpack.c.l.b16 %v102
  %v360 = vunpack.c.l.b16 %v103
  %v361 = vunpack.c.l.b16 %v104
  %v362 = vunpack.c.l.b16 %v105
  %v363 = vunpack.c.l.b16 %v106
  %v364 = vunpack.c.l.b16 %v107
  %v365 = vunpack.c.l.b16 %v108
  %v366 = vunpack.c.l.b16 %v109
  %v367 = vunpack.c.l.b16 %v110
  %v368 = vunpack.c.l.b16 %v111
  %v369 = vunpack.c.l.b16 %v112
  %v370 = vunpack.c.l.b16 %v113
  %v371 = vunpack.c.l.b16 %v114
  %v372 = vunpack.c.l.b16 %v115
  %v373 = vunpack.c.l.b16 %v116
  %v374 = vunpack.c.l.b16 %v117
  %v375 = vunpack.c.l.b16 %v118
  %v376 = vunpack.c.l.b16 %v119
  %v377 = vunpack.c.l.b16 %v120
  %v378 = vunpack.c.l.b16 %v121
  %v379 = vunpack.c.l.b16 %v122
  %v380 = vunpack.c.l.b16 %v123
  %v381 = vunpack.c.l.b16 %v124
  %v382 = vunpack.c.l.b16 %v125
  %v383 = vunpack.c.l.b16 %v126
  %v384 = vunpack.c.l.b16 %v127
  %v385 = vunpack.c.l.b16 %v128
  %v386 = vunpack.c.l.b16 %v129
  %v387 = vunpack.c.l.b16 %v130
  %v388 = vunpack.c.l.b16 %v131
  %v389 = vunpack.c.l.b16 %v132
  %v390 = vunpack.c.l.b16 %v133
  %v391 = vunpack.c.l.b16 %v134
  %v392 = vunpack.c.l.b16 %v135
  %v393 = vunpack.c.l.b16 %v136
  %v394 = vunpack.c.l.b16 %v137
  %v395 = vunpack.c.l.b16 %v138
  %v396 = vunpack.c.l.b16 %v139
  %v397 = vunpack.c.l.b16 %v140
  %v398 = vunpack.c.l.b16 %v141
  %v399 = vunpack.c.l.b16 %v142
  %v400 = vunpack.c.l.b16 %v143
  %v401 = vunpack.c.l.b16 %v144
  %v402 = vunpack.c.l.b16 %v145
  %v403 = vunpack.c.l.b16 %v146
  %v404 = vunpack.c.l.b16 %v147
  %v405 = vunpack.c.l.b16 %v148
  %v406 = vunpack.c.l.b16 %v149
  %v407 = vunpack.c.l.b16 %v150
  %v408 = vunpack.c.l.b16 %v151
  %v409 = vunpack.c.l.b16 %v152
  %v410 = vunpack.c.l.b16 %v153
  %v411 = vunpack.c.l.b16 %v154
  %v412 = vunpack.c.l.b16 %v155
  %v413 = vunpack.c.l.b16 %v156
  %v414 = vunpack.c.l.b16 %v157
  %v415 = vunpack.c.l.b16 %v158
  %v416 = vunpack.c.l.b16 %v159
  %v417 = vunpack.c.l.b16 %v160
  %v418 = vunpack.c.l.b16 %v161
  %v419 = vunpack.c.l.b16 %v162
  %v420 = vpack.c.b16 %v296, %v295
  %v421 = vpack.c.b16 %v298, %v297
  %v422 = vpack.c.b16 %v300, %v299
  %v423 = vpack.c.b16 %v302, %v301
  %v424 = vpack.c.b16 %v304, %v303
  %v425 = vpack.c.b16 %v306, %v305
  %v426 = vpack.c.b16 %v308, %v307
  %v427 = vpack.c.b16 %v310, %v309
  %v428 = vpack.c.b16 %v312, %v311
  %v429 = vpack.c.b16 %v314, %v313
  %v430 = vpack.c.b16 %v316, %v315
  %v431 = vpack.c.b16 %v318, %v317
  %v432 = vpack.c.b16 %v320, %v319
  %v433 = vpack.c.b16 %v322, %v321
  %v434 = vpack.c.b16 %v324, %v323
  %v435 = vpack.c.b16 %v326, %v325
  %v436 = vpack.c.b16 %v328, %v327
  %v437 = vpack.c.b16 %v330, %v329
  %v438 = vpack.c.b16 %v332, %v331
  %v439 = vpack.c.b16 %v334, %v333
  %v440 = vpack.c.b16 %v336, %v335
  %v441 = vpack.c.b16 %v338, %v337
  %v442 = vpack.c.b16 %v340, %v339
  %v443 = vpack.c.b16 %v342, %v341
  %v444 = vpack.c.b16 %v344, %v343
  %v445 = vpack.c.b16 %v346, %v345
  %v446 = vpack.c.b16 %v348, %v347
  %v447 = vpack.c.b16 %v350, %v349
  %v448 = vpack.c.b16 %v352, %v351
  %v449 = vpack.c.b16 %v354, %v353
  %v450 = vpack.c.b16 %v356, %v355
  %v451 = vpack.c.b16 %v358, %v357
  %v452 = vpack.c.b16 %v360, %v359
  %v453 = vpack.c.b16 %v362, %v361
  %v454 = vpack.c.b16 %v364, %v363
  %v455 = vpack.c.b16 %v366, %v365
  %v456 = vpack.c.b16 %v368, %v367
  %v457 = vpack.c.b16 %v370, %v369
  %v458 = vpack.c.b16 %v372, %v371
  %v459 = vpack.c.b16 %v374, %v373
  %v460 = vpack.c.b16 %v376, %v375
  %v461 = vpack.c.b16 %v378, %v377
  %v462 = vpack.c.b16 %v380, %v379
  %v463 = vpack.c.b16 %v382, %v381
  %v464 = vpack.c.b16 %v384, %v383
  %v465 = vpack.c.b16 %v386, %v385
  %v466 = vpack.c.b16 %v388, %v387
  %v467 = vpack.c.b16 %v390, %v389
  %v468 = vpack.c.b16 %v392, %v391
  %v469 = vpack.c.b16 %v394, %v393
  %v470 = vpack.c.b16 %v396, %v395
  %v471 = vpack.c.b16 %v398, %v397
  %v472 = vpack.c.b16 %v400, %v399
  %v473 = vpack.c.b16 %v402, %v401
  %v474 = vpack.c.b16 %v404, %v403
  %v475 = vpack.c.b16 %v406, %v405
  %v476 = vpack.c.b16 %v408, %v407
  %v477 = vpack.c.b16 %v410, %v409
  %v478 = vpack.c.b16 %v412, %v411
  %v479 = vpack.c.b16 %v414, %v413
  %v480 = vpack.c.b16 %v416, %v415
  %v481 = vpack.c.b16 %v418, %v417
  %v482 = vpack.c.b16 %v419, %v419
  %vm545 = vcmask 850944
  %v547 = vsel %vm545, %v37, 0
  %vm549 = vcmask 1043456
  %v551 = vsel %vm549, %v482, 0
  %553 = vmatprep.subr.bf16.mxu0 0
  %554 = vmatpush1.bf16.msra.mxu0 %v420
  %555 = vmatprep.subr.bf16.mxu0 0
  %556 = vmatpush1.bf16.msra.mxu0 %v421
  %557 = vmatprep.subr.bf16.mxu0 0
  %558 = vmatpush1.bf16.msra.mxu0 %v422
  %559 = vmatprep.subr.bf16.mxu0 0
  %560 = vmatpush1.bf16.msra.mxu0 %v423
  %561 = vmatprep.subr.bf16.mxu0 0
  %562 = vmatpush1.bf16.msra.mxu0 %v424
  %563 = vmatprep.subr.bf16.mxu0 0
  %564 = vmatpush1.bf16.msra.mxu0 %v425
  %565 = vmatprep.subr.bf16.mxu0 0
  %566 = vmatpush1.bf16.msra.mxu0 %v426
  %567 = vmatprep.subr.bf16.mxu0 0
  %568 = vmatpush1.bf16.msra.mxu0 %v427
  %569 = vmatprep.subr.bf16.mxu0 0
  %570 = vmatpush1.bf16.msra.mxu0 %v428
  %571 = vmatprep.subr.bf16.mxu0 0
  %572 = vmatpush1.bf16.msra.mxu0 %v429
  %573 = vmatprep.subr.bf16.mxu0 0
  %574 = vmatpush1.bf16.msra.mxu0 %v430
  %575 = vmatprep.subr.bf16.mxu0 0
  %576 = vmatpush1.bf16.msra.mxu0 %v431
  %577 = vmatprep.subr.bf16.mxu0 0
  %578 = vmatpush1.bf16.msra.mxu0 %v432
  %579 = vmatprep.subr.bf16.mxu0 0
  %580 = vmatpush1.bf16.msra.mxu0 %v433
  %581 = vmatprep.subr.bf16.mxu0 0
  %582 = vmatpush1.bf16.msra.mxu0 %v434
  %583 = vmatprep.subr.bf16.mxu0 0
  %584 = vmatpush1.bf16.msra.mxu0 %v435
  %585 = vmatprep.mubr.bf16.mxu0 %v31
  %586 = vmatmul.mubr.bf16.gmra.mrb[0].mxu0 %v30
  %v587 = vpop.f32.mrb[0].mxu0
  %v588 = vadd.f32 %v168, %v587
  %v589 = vpop.f32.mrb[0].mxu0
  %v590 = vpop.f32.mrb[0].mxu0
  %v591 = vpop.f32.mrb[0].mxu0
  %592 = vdwg.mxu0
  %593 = vmatprep.subr.bf16.mxu0 0
  %594 = vmatpush1.bf16.msra.mxu0 %v436
  %595 = vmatprep.subr.bf16.mxu0 0
  %596 = vmatpush1.bf16.msra.mxu0 %v437
  %597 = vmatprep.subr.bf16.mxu0 0
  %598 = vmatpush1.bf16.msra.mxu0 %v438
  %599 = vmatprep.subr.bf16.mxu0 0
  %600 = vmatpush1.bf16.msra.mxu0 %v439
  %601 = vmatprep.subr.bf16.mxu0 0
  %602 = vmatpush1.bf16.msra.mxu0 %v440
  %603 = vmatprep.subr.bf16.mxu0 0
  %604 = vmatpush1.bf16.msra.mxu0 %v441
  %605 = vmatprep.subr.bf16.mxu0 0
  %606 = vmatpush1.bf16.msra.mxu0 %v442
  %607 = vmatprep.subr.bf16.mxu0 0
  %608 = vmatpush1.bf16.msra.mxu0 %v443
  %609 = vmatprep.subr.bf16.mxu0 0
  %610 = vmatpush1.bf16.msra.mxu0 %v444
  %611 = vmatprep.subr.bf16.mxu0 0
  %612 = vmatpush1.bf16.msra.mxu0 %v445
  %613 = vmatprep.subr.bf16.mxu0 0
  %614 = vmatpush1.bf16.msra.mxu0 %v446
  %615 = vmatprep.subr.bf16.mxu0 0
  %616 = vmatpush1.bf16.msra.mxu0 %v447
  %617 = vmatprep.subr.bf16.mxu0 0
  %618 = vmatpush1.bf16.msra.mxu0 %v448
  %619 = vmatprep.subr.bf16.mxu0 0
  %620 = vmatpush1.bf16.msra.mxu0 %v449
  %621 = vmatprep.subr.bf16.mxu0 0
  %622 = vmatpush1.bf16.msra.mxu0 %v450
  %623 = vmatprep.subr.bf16.mxu0 0
  %624 = vmatpush1.bf16.msra.mxu0 %v451
  %625 = vmatprep.mubr.bf16.mxu0 %v33
  %626 = vmatmul.mubr.bf16.gmra.mrb[0].mxu0 %v32
  %v627 = vpop.f32.mrb[0].mxu0
  %v628 = vadd.f32 %v588, %v627
  %v629 = vpop.f32.mrb[0].mxu0
  %v630 = vpop.f32.mrb[0].mxu0
  %v631 = vpop.f32.mrb[0].mxu0
  %632 = vdwg.mxu0
  %633 = vmatprep.subr.bf16.mxu0 0
  %634 = vmatpush1.bf16.msra.mxu0 %v452
  %635 = vmatprep.subr.bf16.mxu0 0
  %636 = vmatpush1.bf16.msra.mxu0 %v453
  %637 = vmatprep.subr.bf16.mxu0 0
  %638 = vmatpush1.bf16.msra.mxu0 %v454
  %639 = vmatprep.subr.bf16.mxu0 0
  %640 = vmatpush1.bf16.msra.mxu0 %v455
  %641 = vmatprep.subr.bf16.mxu0 0
  %642 = vmatpush1.bf16.msra.mxu0 %v456
  %643 = vmatprep.subr.bf16.mxu0 0
  %644 = vmatpush1.bf16.msra.mxu0 %v457
  %645 = vmatprep.subr.bf16.mxu0 0
  %646 = vmatpush1.bf16.msra.mxu0 %v458
  %647 = vmatprep.subr.bf16.mxu0 0
  %648 = vmatpush1.bf16.msra.mxu0 %v459
  %649 = vmatprep.subr.bf16.mxu0 0
  %650 = vmatpush1.bf16.msra.mxu0 %v460
  %651 = vmatprep.subr.bf16.mxu0 0
  %652 = vmatpush1.bf16.msra.mxu0 %v461
  %653 = vmatprep.subr.bf16.mxu0 0
  %654 = vmatpush1.bf16.msra.mxu0 %v462
  %655 = vmatprep.subr.bf16.mxu0 0
  %656 = vmatpush1.bf16.msra.mxu0 %v463
  %657 = vmatprep.subr.bf16.mxu0 0
  %658 = vmatpush1.bf16.msra.mxu0 %v464
  %659 = vmatprep.subr.bf16.mxu0 0
  %660 = vmatpush1.bf16.msra.mxu0 %v465
  %661 = vmatprep.subr.bf16.mxu0 0
  %662 = vmatpush1.bf16.msra.mxu0 %v466
  %663 = vmatprep.subr.bf16.mxu0 0
  %664 = vmatpush1.bf16.msra.mxu0 %v467
  %665 = vmatprep.mubr.bf16.mxu0 %v35
  %666 = vmatmul.mubr.bf16.gmra.mrb[0].mxu0 %v34
  %v667 = vpop.f32.mrb[0].mxu0
  %v668 = vadd.f32 %v628, %v667
  %v669 = vpop.f32.mrb[0].mxu0
  %v670 = vpop.f32.mrb[0].mxu0
  %v671 = vpop.f32.mrb[0].mxu0
  %672 = vdwg.mxu0
  %673 = vmatprep.subr.bf16.mxu0 0
  %674 = vmatpush1.bf16.msra.mxu0 %v468
  %675 = vmatprep.subr.bf16.mxu0 0
  %676 = vmatpush1.bf16.msra.mxu0 %v469
  %677 = vmatprep.subr.bf16.mxu0 0
  %678 = vmatpush1.bf16.msra.mxu0 %v470
  %679 = vmatprep.subr.bf16.mxu0 0
  %680 = vmatpush1.bf16.msra.mxu0 %v471
  %681 = vmatprep.subr.bf16.mxu0 0
  %682 = vmatpush1.bf16.msra.mxu0 %v472
  %683 = vmatprep.subr.bf16.mxu0 0
  %684 = vmatpush1.bf16.msra.mxu0 %v473
  %685 = vmatprep.subr.bf16.mxu0 0
  %686 = vmatpush1.bf16.msra.mxu0 %v474
  %687 = vmatprep.subr.bf16.mxu0 0
  %688 = vmatpush1.bf16.msra.mxu0 %v475
  %689 = vmatprep.subr.bf16.mxu0 0
  %690 = vmatpush1.bf16.msra.mxu0 %v476
  %691 = vmatprep.subr.bf16.mxu0 0
  %692 = vmatpush1.bf16.msra.mxu0 %v477
  %693 = vmatprep.subr.bf16.mxu0 0
  %694 = vmatpush1.bf16.msra.mxu0 %v478
  %695 = vmatprep.subr.bf16.mxu0 0
  %696 = vmatpush1.bf16.msra.mxu0 %v479
  %697 = vmatprep.subr.bf16.mxu0 0
  %698 = vmatpush1.bf16.msra.mxu0 %v480
  %699 = vmatprep.subr.bf16.mxu0 0
  %700 = vmatpush1.bf16.msra.mxu0 %v481
  %701 = vmatprep.subr.bf16.mxu0 0
  %702 = vmatpush1.bf16.msra.mxu0 %v551
  %703 = vmatprep.subr.bf16.mxu0 0
  %704 = vmatpush1.bf16.msra.mxu0 0
  %705 = vmatprep.mubr.bf16.mxu0 %v547
  %706 = vmatmul.mubr.bf16.gmra.mrb[0].mxu0 %v36
  %v707 = vpop.f32.mrb[0].mxu0
  %v708 = vadd.f32 %v668, %v707
  %v709 = vpop.f32.mrb[0].mxu0
  %v710 = vpop.f32.mrb[0].mxu0
  %v711 = vpop.f32.mrb[0].mxu0
  %712 = vdwg.mxu0
  %v713 = vmax.f32 %v708, 0.0
  %v714 = vld [vmem:[%s3] sm:$0x1]
  %v716 = vlaneseq
  %v717 = vshrl.u32 %v716, 7
  %v718 = vsub.s32 0, %v717
  %v719 = vrot.slane %v714, %v718
  %v721 = vmul.f32 %v713, %v719
  %vm722 = vcmask 408576
  %v723 = vsel %vm722, %v721, 0.0
  %724 = vadd.xlane.f32.xlu0 %v723
  %v725 = vpop.xlane.xlu0 %724
  %s726 = sld [smem:[#allocation2]]
  %v727 = vstv %s726
  %v728 = vadd.f32 %v725, %v727
  %vm729 = vcmask 7168
  %730 = vst.msk [vmem:[%s5] sm:$0xff] %vm729, %v728
  // Predicated region
  $region22: #{mlp_forward.1} parent=0 // pred_check
    _
  $region23: #{mlp_forward.1} parent=0 // pred_check_branch
    %732 = sbr.rel (0) target = $region25
  $region24: #{mlp_forward.1} parent=0 // pred_region
    _
  $region25: #{mlp_forward.1} parent=0 // pred_fallthru
    _
  // Predicated region
  $region26: #{mlp_forward.1} parent=0 // pred_check
    _
  $region27: #{mlp_forward.1} parent=0 // pred_check_branch
    %734 = sbr.rel (0) target = $region29
  $region28: #{mlp_forward.1} parent=0 // pred_region
    _
  $region29: #{mlp_forward.1} parent=0 // pred_fallthru
    _

</llo_original>
